<compile_context>
chip_gen: v7x
topology: tpu7x:2x2x1
jax: 0.10.0
libtpu: 0.0.40
codegen_flags: <defaults>
</compile_context>

<pallas_src>
import jax
import jax.numpy as jnp
from jax.experimental import pallas as pl
from jax.experimental.pallas import tpu as pltpu

_HIDDEN = 128


def _round_up(n, m):
    return ((n + m - 1) // m) * m


def _mlp_kernel(x_ref, w1_ref, b1_ref, w2_ref, b2_ref, o_ref):
    # x_ref : (TB, F)  f32      w1_ref: (F, H)  bf16    b1_ref: (1, H)  f32
    # w2_ref: (H, A)   bf16     b2_ref: (1, A)  f32     o_ref : (TB, A) f32
    x = x_ref[...].astype(jnp.bfloat16)            # cast in VMEM, feed MXU bf16
    # Layer 1: bf16 MXU matmul, f32 accumulate, f32 epilogue (bias + ReLU).
    h = jnp.dot(x, w1_ref[...], preferred_element_type=jnp.float32)
    h = jnp.maximum(h + b1_ref[...], 0.0)
    # Layer 2: bf16 MXU matmul, f32 accumulate, f32 bias.
    out = jnp.dot(h.astype(jnp.bfloat16), w2_ref[...],
                  preferred_element_type=jnp.float32)
    o_ref[...] = (out + b2_ref[...]).astype(o_ref.dtype)


def _choose_tile_b(B, F, A, hidden=_HIDDEN, target=2048, budget=16 << 20):
    """Batch tile sized against an explicit per-step VMEM budget.

    Per-step pipelined bytes: 2 (double-buffer) * tb * F * 4 (x f32 in)
                            + 2 * tb * A * 4               (out f32)
    Resident (weights/biases, conservatively assumed double-buffered):
        2 * (F*H + H*A) * 2 bytes (bf16) + 2 * (H + A) * 4 bytes (f32)
    """
    per_row = 2 * F * 4 + 2 * A * 4
    resident = 2 * (F * hidden + hidden * A) * 2 + 2 * (hidden + A) * 4
    avail = max(budget - resident, 1 << 20)
    tb = min(target, avail // per_row)
    if B > 16:
        # Keep >=2 grid steps so the "parallel" batch axis gives both v7x TCs
        # work (no-op on v5e/v6e which have a single TC).
        tb = min(tb, _round_up(pl.cdiv(B, 2), 8))
    tb = min(tb, _round_up(B, 8))
    tb = max(8, (tb // 8) * 8)                      # sublane-aligned
    return int(tb), resident + int(tb) * per_row


def aggregation_mlp(x, w1, b1, w2, b2, *, tile_b=None):
    """x: (B, num_vectors, dim_vectors) f32 -> (B, aggregate_dim) f32.

    Weights are stored transposed vs. PyTorch, i.e. (in_features, out_features).
    """
    B = x.shape[0]
    F = x.shape[1] * x.shape[2]
    H = w1.shape[1]
    A = w2.shape[1]

    x_flat = x.reshape(B, F)                        # nn.Flatten()

    if tile_b is None:
        tb, vmem_bytes = _choose_tile_b(B, F, A, H)
    else:
        tb = tile_b
        _, vmem_bytes = _choose_tile_b(B, F, A, H, target=tile_b)
    grid = (pl.cdiv(B, tb),)

    # Scoped-VMEM limit derived from the working set (headroom for Mosaic
    # internal scratch); 32 MiB cap fits every generation's physical VMEM.
    vmem_limit = max(16 << 20, min(vmem_bytes + (8 << 20), 32 << 20))

    # Advisory cost on the real (unpadded) problem size.
    flops = 2 * B * F * H + 2 * B * H * A
    bytes_accessed = (B * F * 4            # x (f32, read once by the kernel)
                      + F * H * 2 + H * A * 2   # bf16 weights
                      + (H + A) * 4             # f32 biases
                      + B * A * 4)              # f32 output

    out = pl.pallas_call(
        _mlp_kernel,
        out_shape=jax.ShapeDtypeStruct((B, A), jnp.float32),
        grid_spec=pltpu.PrefetchScalarGridSpec(
            num_scalar_prefetch=0,
            grid=grid,
            in_specs=[
                pl.BlockSpec((tb, F), lambda i: (i, 0)),   # x: pipelined per tile
                pl.BlockSpec((F, H), lambda i: (0, 0)),    # weights: VMEM-resident
                pl.BlockSpec((1, H), lambda i: (0, 0)),
                pl.BlockSpec((H, A), lambda i: (0, 0)),
                pl.BlockSpec((1, A), lambda i: (0, 0)),
            ],
            out_specs=pl.BlockSpec((tb, A), lambda i: (i, 0)),
        ),
        compiler_params=pltpu.CompilerParams(
            dimension_semantics=("parallel",),             # megacore on v7x
            vmem_limit_bytes=int(vmem_limit),
        ),
        cost_estimate=pl.CostEstimate(
            flops=flops, transcendentals=0, bytes_accessed=bytes_accessed),
    )(x_flat,
      w1.astype(jnp.bfloat16),
      b1.astype(jnp.float32).reshape(1, H),
      w2.astype(jnp.bfloat16),
      b2.astype(jnp.float32).reshape(1, A))

    return out


def init_params(key, num_vectors, dim_vectors, aggregate_dim, hidden=_HIDDEN):
    """PyTorch-style default Linear init: U[-1/sqrt(fan_in), +1/sqrt(fan_in)]."""
    F = num_vectors * dim_vectors
    k1, k2, k3, k4 = jax.random.split(key, 4)
    bound1 = 1.0 / jnp.sqrt(F)
    bound2 = 1.0 / jnp.sqrt(hidden)
    # Stored as (in_features, out_features) — transposed vs torch's (out, in).
    w1 = jax.random.uniform(k1, (F, hidden), jnp.float32, -bound1, bound1)
    b1 = jax.random.uniform(k2, (1, hidden), jnp.float32, -bound1, bound1)
    w2 = jax.random.uniform(k3, (hidden, aggregate_dim), jnp.float32, -bound2, bound2)
    b2 = jax.random.uniform(k4, (1, aggregate_dim), jnp.float32, -bound2, bound2)
    return w1, b1, w2, b2


if __name__ == "__main__":
    # Small shapes consistent with the module's forward.
    B, num_vectors, dim_vectors, aggregate_dim = 2, 8, 32, 32

    key = jax.random.PRNGKey(0)
    kx, kp = jax.random.split(key)
    x = jax.random.normal(kx, (B, num_vectors, dim_vectors), jnp.float32)
    w1, b1, w2, b2 = init_params(kp, num_vectors, dim_vectors, aggregate_dim)

    out = aggregation_mlp(x, w1, b1, w2, b2)
    out = jax.block_until_ready(out)

    # Pure-JAX reference with matching bf16 matmul operands / f32 accumulation.
    x_flat = x.reshape(B, -1)
    h = jnp.dot(x_flat.astype(jnp.bfloat16), w1.astype(jnp.bfloat16),
                preferred_element_type=jnp.float32) + b1
    h = jnp.maximum(h, 0.0)
    ref = jnp.dot(h.astype(jnp.bfloat16), w2.astype(jnp.bfloat16),
                  preferred_element_type=jnp.float32) + b2

    assert out.shape == (B, aggregate_dim)
    assert jnp.allclose(out, ref, atol=1e-2, rtol=1e-2), \
        float(jnp.max(jnp.abs(out - ref)))

    print("KERNEL_OK")
</pallas_src>

<mosaic_0001>
module attributes {stable_mosaic.version = 11 : i64} {
  func.func @_mlp_kernel(%arg0: i32, %arg1: memref<8x256xf32, #tpu.memory_space<vmem>>, %arg2: memref<256x128xbf16, #tpu.memory_space<vmem>>, %arg3: memref<1x128xf32, #tpu.memory_space<vmem>>, %arg4: memref<128x32xbf16, #tpu.memory_space<vmem>>, %arg5: memref<1x32xf32, #tpu.memory_space<vmem>>, %arg6: memref<8x32xf32, #tpu.memory_space<vmem>>) attributes {dimension_semantics = [#tpu.dimension_semantics<parallel>], iteration_bounds = array<i64: 1>, scalar_prefetch = 0 : i64, scratch_operands = 0 : i64, tpu.core_type = #tpu.core_type<tc>, window_params = [{transform_indices = @transform_0, window_bounds = array<i64: 8, 256>}, {pipeline_mode = #tpu.pipeline_mode<synchronous>, transform_indices = @transform_1, window_bounds = array<i64: 256, 128>}, {pipeline_mode = #tpu.pipeline_mode<synchronous>, transform_indices = @transform_2, window_bounds = array<i64: 1, 128>}, {pipeline_mode = #tpu.pipeline_mode<synchronous>, transform_indices = @transform_3, window_bounds = array<i64: 128, 32>}, {pipeline_mode = #tpu.pipeline_mode<synchronous>, transform_indices = @transform_4, window_bounds = array<i64: 1, 32>}, {transform_indices = @transform_5, window_bounds = array<i64: 8, 32>}]} {
    %c0 = arith.constant 0 : index
    %c0_0 = arith.constant 0 : index
    %0 = vector.load %arg1[%c0, %c0_0] : memref<8x256xf32, #tpu.memory_space<vmem>>, vector<8x256xf32>
    %1 = arith.truncf %0 : vector<8x256xf32> to vector<8x256xbf16>
    %c0_1 = arith.constant 0 : index
    %c0_2 = arith.constant 0 : index
    %2 = vector.load %arg2[%c0_1, %c0_2] : memref<256x128xbf16, #tpu.memory_space<vmem>>, vector<256x128xbf16>
    %cst = arith.constant dense<0.000000e+00> : vector<8x128xf32>
    %3 = tpu.matmul %1, %2, %cst {dimension_numbers = #tpu.dot_dimension_numbers<[1], [0], [0], [1], [0, 0, 1, 1], [], []>} : vector<8x256xbf16>, vector<256x128xbf16>, vector<8x128xf32> -> vector<8x128xf32>
    %c0_3 = arith.constant 0 : index
    %c0_4 = arith.constant 0 : index
    %4 = vector.load %arg3[%c0_3, %c0_4] : memref<1x128xf32, #tpu.memory_space<vmem>>, vector<1x128xf32>
    %5 = vector.broadcast %4 : vector<1x128xf32> to vector<8x128xf32>
    %6 = arith.addf %3, %5 : vector<8x128xf32>
    %cst_5 = arith.constant 0.000000e+00 : f32
    %7 = vector.broadcast %cst_5 : f32 to vector<8x128xf32>
    %8 = arith.maximumf %6, %7 : vector<8x128xf32>
    %9 = arith.truncf %8 : vector<8x128xf32> to vector<8x128xbf16>
    %c0_6 = arith.constant 0 : index
    %c0_7 = arith.constant 0 : index
    %10 = vector.load %arg4[%c0_6, %c0_7] : memref<128x32xbf16, #tpu.memory_space<vmem>>, vector<128x32xbf16>
    %cst_8 = arith.constant dense<0.000000e+00> : vector<8x32xf32>
    %11 = tpu.matmul %9, %10, %cst_8 {dimension_numbers = #tpu.dot_dimension_numbers<[1], [0], [0], [1], [0, 0, 1, 1], [], []>} : vector<8x128xbf16>, vector<128x32xbf16>, vector<8x32xf32> -> vector<8x32xf32>
    %c0_9 = arith.constant 0 : index
    %c0_10 = arith.constant 0 : index
    %12 = vector.load %arg5[%c0_9, %c0_10] : memref<1x32xf32, #tpu.memory_space<vmem>>, vector<1x32xf32>
    %13 = vector.broadcast %12 : vector<1x32xf32> to vector<8x32xf32>
    %14 = arith.addf %11, %13 : vector<8x32xf32>
    %c0_11 = arith.constant 0 : index
    %c0_12 = arith.constant 0 : index
    %15 = vector.load %arg6[%c0_11, %c0_12] : memref<8x32xf32, #tpu.memory_space<vmem>>, vector<8x32xf32>
    tpu.vector_store %arg6[%c0_11, %c0_12], %14 {strides = array<i32>} : memref<8x32xf32, #tpu.memory_space<vmem>>, vector<8x32xf32>,
    return
  }
  func.func @transform_0(%arg0: i32) -> (i32, i32) {
    %c0_i32 = arith.constant 0 : i32
    %c0_i32_0 = arith.constant 0 : i32
    return %arg0, %c0_i32 : i32, i32
  }
  func.func @transform_1(%arg0: i32) -> (i32, i32) {
    %c0_i32 = arith.constant 0 : i32
    %c0_i32_0 = arith.constant 0 : i32
    %c0_i32_1 = arith.constant 0 : i32
    return %c0_i32, %c0_i32_0 : i32, i32
  }
  func.func @transform_2(%arg0: i32) -> (i32, i32) {
    %c0_i32 = arith.constant 0 : i32
    %c0_i32_0 = arith.constant 0 : i32
    %c0_i32_1 = arith.constant 0 : i32
    return %c0_i32, %c0_i32_0 : i32, i32
  }
  func.func @transform_3(%arg0: i32) -> (i32, i32) {
    %c0_i32 = arith.constant 0 : i32
    %c0_i32_0 = arith.constant 0 : i32
    %c0_i32_1 = arith.constant 0 : i32
    return %c0_i32, %c0_i32_0 : i32, i32
  }
  func.func @transform_4(%arg0: i32) -> (i32, i32) {
    %c0_i32 = arith.constant 0 : i32
    %c0_i32_0 = arith.constant 0 : i32
    %c0_i32_1 = arith.constant 0 : i32
    return %c0_i32, %c0_i32_0 : i32, i32
  }
  func.func @transform_5(%arg0: i32) -> (i32, i32) {
    %c0_i32 = arith.constant 0 : i32
    %c0_i32_0 = arith.constant 0 : i32
    return %arg0, %c0_i32 : i32, i32
  }
}

</mosaic_0001>

<llo_original>
// kernel: tpu_custom_call.1
$region0: #{tpu_custom_call.1}
  #allocation0 [shape = 'u32[]', space=smem, size = 0x4, offset = 0x4, fixed_abs, tag = 'smem constant byte address 0x4 - core index']
  #allocation1 [shape = 'u32[144,128]{1,0:T(1,128)}', space=vmem, size = 0x12000, scoped, tag = 'internal scratch']
  %s0 = inlined_call_operand.vmem [shape: f32[2,256], index: 0, kind: input, shape index: {}]
  %s1 = inlined_call_operand.hbm [shape: bf16[256,128], index: 1, kind: input, shape index: {}]
  %s2 = inlined_call_operand.vmem [shape: f32[1,128], index: 2, kind: input, shape index: {}]
  %s3 = inlined_call_operand.vmem [shape: bf16[128,32], index: 3, kind: input, shape index: {}]
  %s4 = inlined_call_operand.vmem [shape: f32[1,32], index: 4, kind: input, shape index: {}]
  %s5 = inlined_call_operand.hbm [shape: f32[2,32], index: 5, kind: output, shape index: {}]
  %s6 = sld [smem:[#allocation0]]
  $region34: #{tpu_custom_call.1} parent=0
    _
  %s8 = ssub.s32 1, %s6
  %s9 = scalar_select 0, %s8, %s6
  $region1: #{tpu_custom_call.1} parent=0
    #allocation2 [shape = 'u8[65536]{0}', space=vmem, size = 0x10000, scoped, tag = 'input window, operand 1, single buffered']
    #allocation3 [shape = 's32[1]{0}', space=sflag, size = 0x4, scoped, tag = 'scoped memory for tpu_custom_call.1']
    #allocation4 [shape = 's32[1]{0}', space=sflag, size = 0x4, scoped, tag = 'scoped memory for tpu_custom_call.1']
    #allocation5 [shape = 'u8[4096]{0}', space=vmem, size = 0x1000, scoped, tag = 'output window, operand 0, single buffered']
    %10 = vsyncpa [#allocation3], 0
    %11 = vsyncpa [#allocation4], 0
    // Predicated region
    $region2: #{tpu_custom_call.1} parent=1 // pred_check
      _
    $region3: #{tpu_custom_call.1} parent=1 // pred_check_branch
      %13 = sbr.rel (0) target = $region5
    $region4: #{tpu_custom_call.1} parent=1 // pred_region
      _
    $region5: #{tpu_custom_call.1} parent=1 // pred_fallthru
      _
    // Predicated region
    $region6: #{tpu_custom_call.1} parent=1 // pred_check
      _
    $region7: #{tpu_custom_call.1} parent=1 // pred_check_branch
      %15 = sbr.rel (0) target = $region9
    $region8: #{tpu_custom_call.1} parent=1 // pred_region
      %s17 = ssub.s32 2048, 2048
      %18 = vsyncadd [#allocation3], %s17
      %s19 = sshll.u32 [#allocation2], 4
      %s20 = int_to_ptr.vmem [resolvable:$true] %s19
      %25 = dma.hbm_to_vmem [thread:$0]  %s1, 2048, %s20, [#allocation3], 64, 64, 4
    $region9: #{tpu_custom_call.1} parent=1 // pred_fallthru
      _
    // Predicated region
    $region10: #{tpu_custom_call.1} parent=1 // pred_check
      _
    $region11: #{tpu_custom_call.1} parent=1 // pred_check_branch
      %27 = sbr.rel (0) target = $region13
    $region12: #{tpu_custom_call.1} parent=1 // pred_region
      _
    $region13: #{tpu_custom_call.1} parent=1 // pred_fallthru
      _
    // Predicated region
    $region14: #{tpu_custom_call.1} parent=1 // pred_check
      _
    $region15: #{tpu_custom_call.1} parent=1 // pred_check_branch
      %29 = sbr.rel (0) target = $region17
    $region16: #{tpu_custom_call.1} parent=1 // pred_region
      _
    $region17: #{tpu_custom_call.1} parent=1 // pred_fallthru
      _
    // Predicated region
    $region18: #{tpu_custom_call.1} parent=1 // pred_check
      _
    $region19: #{tpu_custom_call.1} parent=1 // pred_check_branch
      %31 = sbr.rel (0) target = $region21
    $region20: #{tpu_custom_call.1} parent=1 // pred_region
      _
    $region21: #{tpu_custom_call.1} parent=1 // pred_fallthru
      _
    // Predicated region
    $region22: #{tpu_custom_call.1} parent=1 // pred_check
      _
    $region23: #{tpu_custom_call.1} parent=1 // pred_check_branch
      %33 = sbr.rel (0) target = $region25
    $region24: #{tpu_custom_call.1} parent=1 // pred_region
      %34 = dma.done [#allocation3], 2048
    $region25: #{tpu_custom_call.1} parent=1 // pred_fallthru
      _
    %v36 = vld [vmem:[%s0] sm:$0xf]
    %v37 = vld [vmem:[%s0 + $0x4] sm:$0xf]
    %v38 = vld [vmem:[%s0 + $0x8] sm:$0xf]
    %v39 = vld [vmem:[%s0 + $0xc] sm:$0xf]
    %v44 = vcombine.low %v36, %v37
    %v45 = vcombine.low %v38, %v39
    %v47 = vunpack.c.l.s4 1983009808
    %v48 = vunpack.c.0.s8 %v47
    %v49 = vlaneseq
    %v50 = vshrl.u32 %v49, 7
    %v51 = vsub.s32 %v48, %v50
    %v52 = vrot.slane %v44, %v51
    %v54 = vunpack.c.l.s4 1983009808
    %v55 = vunpack.c.0.s8 %v54
    %v56 = vlaneseq
    %v57 = vshrl.u32 %v56, 7
    %v58 = vsub.s32 %v55, %v57
    %v59 = vrot.slane %v45, %v58
    %v60 = vcombine.low %v52, %v59
    %v61 = vcombine.high %v52, %v59
    %v64 = vpack.c.bf16 %v60, %v60
    %v65 = vpack.c.bf16 %v61, %v61
    %v66 = vld [vmem:[#allocation2] sm:$0xf]
    %v67 = vld [vmem:[#allocation2 + $0x4] sm:$0xf]
    %v68 = vld [vmem:[#allocation2 + $0x8] sm:$0xf]
    %v69 = vld [vmem:[#allocation2 + $0xc] sm:$0xf]
    %v70 = vld [vmem:[#allocation2 + $0x10] sm:$0xf]
    %v71 = vld [vmem:[#allocation2 + $0x14] sm:$0xf]
    %v72 = vld [vmem:[#allocation2 + $0x18] sm:$0xf]
    %v73 = vld [vmem:[#allocation2 + $0x1c] sm:$0xf]
    %v74 = vld [vmem:[#allocation2 + $0x20] sm:$0xf]
    %v75 = vld [vmem:[#allocation2 + $0x24] sm:$0xf]
    %v76 = vld [vmem:[#allocation2 + $0x28] sm:$0xf]
    %v77 = vld [vmem:[#allocation2 + $0x2c] sm:$0xf]
    %v78 = vld [vmem:[#allocation2 + $0x30] sm:$0xf]
    %v79 = vld [vmem:[#allocation2 + $0x34] sm:$0xf]
    %v80 = vld [vmem:[#allocation2 + $0x38] sm:$0xf]
    %v81 = vld [vmem:[#allocation2 + $0x3c] sm:$0xf]
    %v82 = vld [vmem:[#allocation2 + $0x40] sm:$0xf]
    %v83 = vld [vmem:[#allocation2 + $0x44] sm:$0xf]
    %v84 = vld [vmem:[#allocation2 + $0x48] sm:$0xf]
    %v85 = vld [vmem:[#allocation2 + $0x4c] sm:$0xf]
    %v86 = vld [vmem:[#allocation2 + $0x50] sm:$0xf]
    %v87 = vld [vmem:[#allocation2 + $0x54] sm:$0xf]
    %v88 = vld [vmem:[#allocation2 + $0x58] sm:$0xf]
    %v89 = vld [vmem:[#allocation2 + $0x5c] sm:$0xf]
    %v90 = vld [vmem:[#allocation2 + $0x60] sm:$0xf]
    %v91 = vld [vmem:[#allocation2 + $0x64] sm:$0xf]
    %v92 = vld [vmem:[#allocation2 + $0x68] sm:$0xf]
    %v93 = vld [vmem:[#allocation2 + $0x6c] sm:$0xf]
    %v94 = vld [vmem:[#allocation2 + $0x70] sm:$0xf]
    %v95 = vld [vmem:[#allocation2 + $0x74] sm:$0xf]
    %v96 = vld [vmem:[#allocation2 + $0x78] sm:$0xf]
    %v97 = vld [vmem:[#allocation2 + $0x7c] sm:$0xf]
    %v98 = vld [vmem:[%s2] sm:$0x1]
    %v100 = vlaneseq
    %v101 = vshrl.u32 %v100, 7
    %v102 = vsub.s32 0, %v101
    %v103 = vrot.slane %v98, %v102
    %v137 = vunpack.c.l.b16 %v66
    %v138 = vunpack.c.l.b16 %v67
    %v139 = vunpack.c.l.b16 %v68
    %v140 = vunpack.c.l.b16 %v69
    %v141 = vunpack.c.l.b16 %v70
    %v142 = vunpack.c.l.b16 %v71
    %v143 = vunpack.c.l.b16 %v72
    %v144 = vunpack.c.l.b16 %v73
    %v145 = vunpack.c.l.b16 %v74
    %v146 = vunpack.c.l.b16 %v75
    %v147 = vunpack.c.l.b16 %v76
    %v148 = vunpack.c.l.b16 %v77
    %v149 = vunpack.c.l.b16 %v78
    %v150 = vunpack.c.l.b16 %v79
    %v151 = vunpack.c.l.b16 %v80
    %v152 = vunpack.c.l.b16 %v81
    %v153 = vunpack.c.l.b16 %v82
    %v154 = vunpack.c.l.b16 %v83
    %v155 = vunpack.c.l.b16 %v84
    %v156 = vunpack.c.l.b16 %v85
    %v157 = vunpack.c.l.b16 %v86
    %v158 = vunpack.c.l.b16 %v87
    %v159 = vunpack.c.l.b16 %v88
    %v160 = vunpack.c.l.b16 %v89
    %v161 = vunpack.c.l.b16 %v90
    %v162 = vunpack.c.l.b16 %v91
    %v163 = vunpack.c.l.b16 %v92
    %v164 = vunpack.c.l.b16 %v93
    %v165 = vunpack.c.l.b16 %v94
    %v166 = vunpack.c.l.b16 %v95
    %v167 = vunpack.c.l.b16 %v96
    %v168 = vunpack.c.l.b16 %v97
    %v169 = vpack.c.b16 %v138, %v137
    %v170 = vpack.c.b16 %v140, %v139
    %v171 = vpack.c.b16 %v142, %v141
    %v172 = vpack.c.b16 %v144, %v143
    %v173 = vpack.c.b16 %v146, %v145
    %v174 = vpack.c.b16 %v148, %v147
    %v175 = vpack.c.b16 %v150, %v149
    %v176 = vpack.c.b16 %v152, %v151
    %v177 = vpack.c.b16 %v154, %v153
    %v178 = vpack.c.b16 %v156, %v155
    %v179 = vpack.c.b16 %v158, %v157
    %v180 = vpack.c.b16 %v160, %v159
    %v181 = vpack.c.b16 %v162, %v161
    %v182 = vpack.c.b16 %v164, %v163
    %v183 = vpack.c.b16 %v166, %v165
    %v184 = vpack.c.b16 %v168, %v167
    %201 = vmatprep.subr.bf16.mxu0 0
    %202 = vmatpush1.bf16.msra.mxu0 %v169
    %203 = vmatprep.subr.bf16.mxu0 0
    %204 = vmatpush1.bf16.msra.mxu0 %v170
    %205 = vmatprep.subr.bf16.mxu0 0
    %206 = vmatpush1.bf16.msra.mxu0 %v171
    %207 = vmatprep.subr.bf16.mxu0 0
    %208 = vmatpush1.bf16.msra.mxu0 %v172
    %209 = vmatprep.subr.bf16.mxu0 0
    %210 = vmatpush1.bf16.msra.mxu0 %v173
    %211 = vmatprep.subr.bf16.mxu0 0
    %212 = vmatpush1.bf16.msra.mxu0 %v174
    %213 = vmatprep.subr.bf16.mxu0 0
    %214 = vmatpush1.bf16.msra.mxu0 %v175
    %215 = vmatprep.subr.bf16.mxu0 0
    %216 = vmatpush1.bf16.msra.mxu0 %v176
    %217 = vmatprep.subr.bf16.mxu0 0
    %218 = vmatpush1.bf16.msra.mxu0 %v177
    %219 = vmatprep.subr.bf16.mxu0 0
    %220 = vmatpush1.bf16.msra.mxu0 %v178
    %221 = vmatprep.subr.bf16.mxu0 0
    %222 = vmatpush1.bf16.msra.mxu0 %v179
    %223 = vmatprep.subr.bf16.mxu0 0
    %224 = vmatpush1.bf16.msra.mxu0 %v180
    %225 = vmatprep.subr.bf16.mxu0 0
    %226 = vmatpush1.bf16.msra.mxu0 %v181
    %227 = vmatprep.subr.bf16.mxu0 0
    %228 = vmatpush1.bf16.msra.mxu0 %v182
    %229 = vmatprep.subr.bf16.mxu0 0
    %230 = vmatpush1.bf16.msra.mxu0 %v183
    %231 = vmatprep.subr.bf16.mxu0 0
    %232 = vmatpush1.bf16.msra.mxu0 %v184
    %233 = vmatprep.mubr.bf16.mxu0 %v65
    %234 = vmatmul.mubr.bf16.gmra.mrb[0].mxu0 %v64
    %v235 = vpop.f32.mrb[0].mxu0
    %v236 = vadd.f32 %v103, %v235
    %v237 = vpop.f32.mrb[0].mxu0
    %v238 = vpop.f32.mrb[0].mxu0
    %v239 = vpop.f32.mrb[0].mxu0
    %240 = vdwg.mxu0
    %v241 = vmax.f32 %v236, 0.0
    %v242 = vpack.c.bf16 %v241, %v241
    %v243 = vld [vmem:[%s3] sm:$0xf]
    %v244 = vld [vmem:[%s3 + $0x4] sm:$0xf]
    %v245 = vld [vmem:[%s3 + $0x8] sm:$0xf]
    %v246 = vld [vmem:[%s3 + $0xc] sm:$0xf]
    %v247 = vld [vmem:[%s3 + $0x10] sm:$0xf]
    %v248 = vld [vmem:[%s3 + $0x14] sm:$0xf]
    %v249 = vld [vmem:[%s3 + $0x18] sm:$0xf]
    %v250 = vld [vmem:[%s3 + $0x1c] sm:$0xf]
    %v251 = vld [vmem:[%s3 + $0x20] sm:$0xf]
    %v252 = vld [vmem:[%s3 + $0x24] sm:$0xf]
    %v253 = vld [vmem:[%s3 + $0x28] sm:$0xf]
    %v254 = vld [vmem:[%s3 + $0x2c] sm:$0xf]
    %v255 = vld [vmem:[%s3 + $0x30] sm:$0xf]
    %v256 = vld [vmem:[%s3 + $0x34] sm:$0xf]
    %v257 = vld [vmem:[%s3 + $0x38] sm:$0xf]
    %v258 = vld [vmem:[%s3 + $0x3c] sm:$0xf]
    %v259 = vld [vmem:[%s4] sm:$0x1]
    %v261 = vlaneseq
    %v262 = vshrl.u32 %v261, 7
    %v263 = vsub.s32 0, %v262
    %v264 = vrot.slane %v259, %v263
    %v282 = vunpack.c.l.b16 %v243
    %v283 = vunpack.c.l.b16 %v244
    %v284 = vunpack.c.l.b16 %v245
    %v285 = vunpack.c.l.b16 %v246
    %v286 = vunpack.c.l.b16 %v247
    %v287 = vunpack.c.l.b16 %v248
    %v288 = vunpack.c.l.b16 %v249
    %v289 = vunpack.c.l.b16 %v250
    %v290 = vunpack.c.l.b16 %v251
    %v291 = vunpack.c.l.b16 %v252
    %v292 = vunpack.c.l.b16 %v253
    %v293 = vunpack.c.l.b16 %v254
    %v294 = vunpack.c.l.b16 %v255
    %v295 = vunpack.c.l.b16 %v256
    %v296 = vunpack.c.l.b16 %v257
    %v297 = vunpack.c.l.b16 %v258
    %v298 = vpack.c.b16 %v283, %v282
    %v299 = vpack.c.b16 %v285, %v284
    %v300 = vpack.c.b16 %v287, %v286
    %v301 = vpack.c.b16 %v289, %v288
    %v302 = vpack.c.b16 %v291, %v290
    %v303 = vpack.c.b16 %v293, %v292
    %v304 = vpack.c.b16 %v295, %v294
    %v305 = vpack.c.b16 %v297, %v296
    %314 = vmatprep.subr.bf16.mxu0 0
    %315 = vmatpush1.bf16.msra.mxu0 %v298
    %316 = vmatprep.subr.bf16.mxu0 0
    %317 = vmatpush1.bf16.msra.mxu0 %v299
    %318 = vmatprep.subr.bf16.mxu0 0
    %319 = vmatpush1.bf16.msra.mxu0 %v300
    %320 = vmatprep.subr.bf16.mxu0 0
    %321 = vmatpush1.bf16.msra.mxu0 %v301
    %322 = vmatprep.subr.bf16.mxu0 0
    %323 = vmatpush1.bf16.msra.mxu0 %v302
    %324 = vmatprep.subr.bf16.mxu0 0
    %325 = vmatpush1.bf16.msra.mxu0 %v303
    %326 = vmatprep.subr.bf16.mxu0 0
    %327 = vmatpush1.bf16.msra.mxu0 %v304
    %328 = vmatprep.subr.bf16.mxu0 0
    %329 = vmatpush1.bf16.msra.mxu0 %v305
    %330 = vmatprep.subr.bf16.mxu0 0
    %331 = vmatpush1.bf16.msra.mxu0 0
    %332 = vmatprep.subr.bf16.mxu0 0
    %333 = vmatpush1.bf16.msra.mxu0 0
    %334 = vmatprep.subr.bf16.mxu0 0
    %335 = vmatpush1.bf16.msra.mxu0 0
    %336 = vmatprep.subr.bf16.mxu0 0
    %337 = vmatpush1.bf16.msra.mxu0 0
    %338 = vmatprep.subr.bf16.mxu0 0
    %339 = vmatpush1.bf16.msra.mxu0 0
    %340 = vmatprep.subr.bf16.mxu0 0
    %341 = vmatpush1.bf16.msra.mxu0 0
    %342 = vmatprep.subr.bf16.mxu0 0
    %343 = vmatpush1.bf16.msra.mxu0 0
    %344 = vmatprep.subr.bf16.mxu0 0
    %345 = vmatpush1.bf16.msra.mxu0 0
    %346 = vmatprep.mubr.bf16.mxu0 0
    %347 = vmatmul.mubr.bf16.gmra.mrb[0].mxu0 %v242
    %v348 = vpop.f32.mrb[0].mxu0
    %v349 = vadd.f32 %v264, %v348
    %v350 = vpop.f32.mrb[0].mxu0
    %v351 = vpop.f32.mrb[0].mxu0
    %v352 = vpop.f32.mrb[0].mxu0
    %353 = vdwg.mxu0
    %vm354 = vcmask 261120
    %355 = vst.msk [vmem:[#allocation5] sm:$0xff] %vm354, %v349
    // Predicated region
    $region26: #{tpu_custom_call.1} parent=1 // pred_check
      _
    $region27: #{tpu_custom_call.1} parent=1 // pred_check_branch
      %357 = sbr.rel (0) target = $region29
    $region28: #{tpu_custom_call.1} parent=1 // pred_region
      %s359 = ssub.s32 128, 32
      %360 = vsyncadd [#allocation4], %s359
      %s361 = sshll.u32 [#allocation5], 4
      %s362 = int_to_ptr.vmem [resolvable:$true] %s361
      %367 = dma.vmem_to_hbm [thread:$0]  %s362, 32, %s5, [#allocation4], 32, 32, 2
    $region29: #{tpu_custom_call.1} parent=1 // pred_fallthru
      _
    // Predicated region
    $region30: #{tpu_custom_call.1} parent=1 // pred_check
      _
    $region31: #{tpu_custom_call.1} parent=1 // pred_check_branch
      %369 = sbr.rel (0) target = $region33
    $region32: #{tpu_custom_call.1} parent=1 // pred_region
      %370 = dma.done [#allocation4], 128
    $region33: #{tpu_custom_call.1} parent=1 // pred_fallthru
      _
    %371 = vsyncpa [#allocation3], 1
    %372 = vsyncpa [#allocation4], 1

</llo_original>
